<compile_context>
chip_gen: v5e
topology: v5e:2x2
jax: 0.10.0
libtpu: 0.0.40
codegen_flags: <defaults>
</compile_context>

<pallas_src>
import functools

import jax
import jax.numpy as jnp
from jax import lax
from jax.experimental import pallas as pl
from jax.experimental.pallas import tpu as pltpu

TIME_WINDOW = 5
THRESH = 0.5
DECAY = 0.25
BN_EPS = 1e-5


def _round8(n):
    return ((n + 7) // 8) * 8


def _cparams(grid_ndim):
    # 32 MiB scoped VMEM: ample for this working set (<2 MiB per grid step) and
    # safe on v5e/v6e (128 MiB) as well as v7x (64 MiB).  Re-derive tiling/limit
    # if T*H*W or the channel counts are scaled up (v7x has half the VMEM).
    return pltpu.CompilerParams(
        dimension_semantics=("parallel",) * grid_ndim,
        vmem_limit_bytes=32 * 1024 * 1024,
    )


# --------------------------------------------------------------------------- #
# pltpu.roll sign-convention probe (run once, on device, outside jit).
# --------------------------------------------------------------------------- #
_ROLL_NPY = None


def _probe_roll_convention():
    def kern(x_ref, o_ref):
        o_ref[...] = pltpu.roll(x_ref[...], 1, axis=1)

    x = jnp.tile(jnp.arange(128, dtype=jnp.float32)[None, :], (8, 1))
    y = pl.pallas_call(
        kern, out_shape=jax.ShapeDtypeStruct((8, 128), jnp.float32))(x)
    v = int(jax.device_get(y[0, 0]))
    if v == 127:
        return True    # pltpu.roll == jnp.roll:   out[p] = x[(p - shift) % n]
    if v == 1:
        return False   # reversed convention:      out[p] = x[(p + shift) % n]
    raise RuntimeError(f"unexpected pltpu.roll semantics (probe value {v})")


def _roll_npy():
    global _ROLL_NPY
    if _ROLL_NPY is None:
        _ROLL_NPY = _probe_roll_convention()
    return _ROLL_NPY


# --------------------------------------------------------------------------- #
# Layout / weight / mask helpers (wrapper side, run once per call).
# --------------------------------------------------------------------------- #
def _to_ctm(x5d):
    # [T, B, C, H, W] -> [B, C, T*H*W]   (lane axis = T*H*W, dense)
    t, b, c, h, w = x5d.shape
    return jnp.transpose(x5d, (1, 2, 0, 3, 4)).reshape(b, c, t * h * w)


def _from_ctm(y, t, h, w):
    # [B, C, T*H*W] -> [T, B, C, H, W]
    b, c, _ = y.shape
    return jnp.transpose(y.reshape(b, c, t, h, w), (2, 0, 1, 3, 4))


def _flatten_w_padded(w_oihw, cp):
    # OIHW -> (O, k*k*cp), tap order (kh, kw, cin); input-channel axis zero-padded
    # to cp so it matches the sublane-padded im2col pieces.
    o, i, kh, kw = w_oihw.shape
    wt = jnp.transpose(w_oihw.astype(jnp.float32), (0, 2, 3, 1))   # (o, kh, kw, i)
    wt = jnp.pad(wt, ((0, 0), (0, 0), (0, 0), (0, cp - i)))
    return wt.reshape(o, kh * kw * cp)


def _build_stage_a_weight(w1, w_sc, k, cinp):
    """Combined stage-A weight: [shortcut rows (centre tap only); pad; w1; pad]."""
    c1, cin = w1.shape[0], w1.shape[1]
    c1p = _round8(c1)
    cols = k * k * cinp
    w1f = _flatten_w_padded(w1, cinp)
    blocks = []
    if w_sc is not None:
        csc = w_sc.shape[0]
        cscp = _round8(csc)
        center = ((k - 1) // 2) * k + (k - 1) // 2
        wsc2d = w_sc.reshape(csc, cin).astype(jnp.float32)
        wsc_rows = jnp.zeros((csc, cols), jnp.float32)
        wsc_rows = wsc_rows.at[:, center * cinp:center * cinp + cin].set(wsc2d)
        blocks += [wsc_rows, jnp.zeros((cscp - csc, cols), jnp.float32)]
    else:
        csc, cscp = 0, 0
    blocks += [w1f, jnp.zeros((c1p - c1, cols), jnp.float32)]
    w_comb = jnp.concatenate(blocks, axis=0).astype(jnp.bfloat16)
    return w_comb, csc, cscp, c1p


def _build_masks(k, t, h, w, cp):
    """Prebuilt 0/1 boundary masks, one (cp, M) slab per tap, stacked: (k*k*cp, M)."""
    hw = h * w
    m = t * hw
    pos = jnp.arange(m, dtype=jnp.int32) % hw
    hh = pos // w
    ww = pos % w
    pad = (k - 1) // 2
    rows = []
    for ih in range(k):
        for iw in range(k):
            dh, dw = ih - pad, iw - pad
            valid = ((hh + dh >= 0) & (hh + dh < h) &
                     (ww + dw >= 0) & (ww + dw < w)).astype(jnp.float32)
            rows.append(jnp.broadcast_to(valid[None, :], (cp, m)))
    return jnp.concatenate(rows, axis=0)


# --------------------------------------------------------------------------- #
# In-kernel building blocks.
# --------------------------------------------------------------------------- #
def _spike_seq(x, t, hw):
    """LIF mem_update over time.  x: (C, T*HW) f32 -> 0/1 spikes (C, T*HW) f32."""
    mem = x[:, 0:hw]
    spike = (mem > THRESH).astype(jnp.float32)
    spikes = [spike]
    for i in range(1, t):
        mem = mem * DECAY * (1.0 - spike) + x[:, i * hw:(i + 1) * hw]
        spike = (mem > THRESH).astype(jnp.float32)
        spikes.append(spike)
    return jnp.concatenate(spikes, axis=-1)     # 128-lane aligned concat


def _conv_from_spikes(spk, w2d, mask_ref, *, k, h, w, npy_roll):
    """'same' conv as ONE MXU matmul.  spk: (cp, M) f32 0/1; w2d: (R, k*k*cp) bf16."""
    cp, m = spk.shape
    if k == 1:
        return jnp.dot(w2d, spk.astype(jnp.bfloat16),
                       preferred_element_type=jnp.float32)
    pad = (k - 1) // 2
    pieces = []
    for ih in range(k):
        for iw in range(k):
            dh, dw = ih - pad, iw - pad
            off = dh * w + dw
            if off == 0:                         # centre tap: mask is all ones
                pieces.append(spk)
                continue
            # want piece[:, p] = spk[:, (p + off) % m]; wrapped/OOB taps are
            # killed by the prebuilt boundary masks.
            shift = (-off) % m if npy_roll else off % m
            rolled = pltpu.roll(spk, shift, axis=1)          # XLU lane rotate
            tap = ih * k + iw
            mask = mask_ref[tap * cp:(tap + 1) * cp, :]      # prebuilt 0/1 f32
            pieces.append(rolled * mask)
    # 8-row f32 pieces -> tile-aligned sublane concat, single cast to bf16.
    patches = jnp.concatenate(pieces, axis=0).astype(jnp.bfloat16)  # (k*k*cp, M)
    return jnp.dot(w2d, patches, preferred_element_type=jnp.float32)


def _stat_block(v):
    """(C, M) f32 -> lane-dense (C, 128) stats: col 0 = sum, col 1 = sum of squares."""
    s1 = jnp.sum(v, axis=-1, keepdims=True)
    s2 = jnp.sum(v * v, axis=-1, keepdims=True)
    lane = lax.broadcasted_iota(jnp.int32, (v.shape[0], 128), 1)
    return jnp.where(lane == 0, s1, jnp.where(lane == 1, s2, 0.0))


# --------------------------------------------------------------------------- #
# Stage A: spike(x) -> fused {1x1 shortcut + kxk} conv (one matmul) + BN stats.
# --------------------------------------------------------------------------- #
def _stage_a_kernel(x_ref, w_ref, mask_ref, s_ref, r1_ref, sst_ref, rst_ref,
                    *, t, h, w, k, csc, cscp, c1p, npy_roll):
    x = x_ref[0]                                             # (cin_pad, M) f32
    spk = _spike_seq(x, t, h * w)
    out = _conv_from_spikes(spk, w_ref[...], mask_ref, k=k, h=h, w=w,
                            npy_roll=npy_roll)               # (cscp + c1p, M) f32
    s = out[0:csc]
    r1 = out[cscp:cscp + c1p]                                # pad rows are exact zeros
    s_ref[0] = s
    r1_ref[0] = r1
    sst_ref[0] = _stat_block(s)
    rst_ref[0] = _stat_block(r1)


def _stage_a(xp, w_comb, masks, *, t, h, w, k, csc, cscp, c1p, npy_roll):
    b, cinp, m = xp.shape
    rows = w_comb.shape[0]
    kernel = functools.partial(_stage_a_kernel, t=t, h=h, w=w, k=k,
                               csc=csc, cscp=cscp, c1p=c1p, npy_roll=npy_roll)
    return pl.pallas_call(
        kernel,
        out_shape=(jax.ShapeDtypeStruct((b, csc, m), jnp.float32),
                   jax.ShapeDtypeStruct((b, c1p, m), jnp.float32),
                   jax.ShapeDtypeStruct((b, csc, 128), jnp.float32),
                   jax.ShapeDtypeStruct((b, c1p, 128), jnp.float32)),
        grid=(b,),
        in_specs=[pl.BlockSpec((1, cinp, m), lambda i: (i, 0, 0)),
                  pl.BlockSpec((rows, k * k * cinp), lambda i: (0, 0)),
                  pl.BlockSpec((k * k * cinp, m), lambda i: (0, 0))],
        out_specs=(pl.BlockSpec((1, csc, m), lambda i: (i, 0, 0)),
                   pl.BlockSpec((1, c1p, m), lambda i: (i, 0, 0)),
                   pl.BlockSpec((1, csc, 128), lambda i: (i, 0, 0)),
                   pl.BlockSpec((1, c1p, 128), lambda i: (i, 0, 0))),
        compiler_params=_cparams(1),
    )(xp, w_comb, masks)


def _stage_a_ns_kernel(x_ref, w_ref, mask_ref, r1_ref, rst_ref,
                       *, t, h, w, k, npy_roll):
    x = x_ref[0]
    spk = _spike_seq(x, t, h * w)
    r1 = _conv_from_spikes(spk, w_ref[...], mask_ref, k=k, h=h, w=w,
                           npy_roll=npy_roll)
    r1_ref[0] = r1
    rst_ref[0] = _stat_block(r1)


def _stage_a_ns(xp, w_comb, masks, *, t, h, w, k, npy_roll):
    # w_sc is None: no shortcut matmul, no s_out / s_stats outputs (dead work skipped).
    b, cinp, m = xp.shape
    c1p = w_comb.shape[0]
    kernel = functools.partial(_stage_a_ns_kernel, t=t, h=h, w=w, k=k,
                               npy_roll=npy_roll)
    return pl.pallas_call(
        kernel,
        out_shape=(jax.ShapeDtypeStruct((b, c1p, m), jnp.float32),
                   jax.ShapeDtypeStruct((b, c1p, 128), jnp.float32)),
        grid=(b,),
        in_specs=[pl.BlockSpec((1, cinp, m), lambda i: (i, 0, 0)),
                  pl.BlockSpec((c1p, k * k * cinp), lambda i: (0, 0)),
                  pl.BlockSpec((k * k * cinp, m), lambda i: (0, 0))],
        out_specs=(pl.BlockSpec((1, c1p, m), lambda i: (i, 0, 0)),
                   pl.BlockSpec((1, c1p, 128), lambda i: (i, 0, 0))),
        compiler_params=_cparams(1),
    )(xp, w_comb, masks)


# --------------------------------------------------------------------------- #
# Stage B: BN-apply -> spike -> kxk conv (one matmul) + BN stats.
# --------------------------------------------------------------------------- #
def _stage_b_kernel(r1_ref, sc_ref, bi_ref, w_ref, mask_ref, r2_ref, rst_ref,
                    *, t, h, w, k, npy_roll):
    y = r1_ref[0] * sc_ref[...] + bi_ref[...]                # fused BN apply (f32)
    spk = _spike_seq(y, t, h * w)
    r2 = _conv_from_spikes(spk, w_ref[...], mask_ref, k=k, h=h, w=w,
                           npy_roll=npy_roll)
    r2_ref[0] = r2
    rst_ref[0] = _stat_block(r2)


def _stage_b(r1p, scale1p, bias1p, w2f, masks, *, t, h, w, k, npy_roll):
    b, c1p, m = r1p.shape
    c2 = w2f.shape[0]
    kernel = functools.partial(_stage_b_kernel, t=t, h=h, w=w, k=k,
                               npy_roll=npy_roll)
    return pl.pallas_call(
        kernel,
        out_shape=(jax.ShapeDtypeStruct((b, c2, m), jnp.float32),
                   jax.ShapeDtypeStruct((b, c2, 128), jnp.float32)),
        grid=(b,),
        in_specs=[pl.BlockSpec((1, c1p, m), lambda i: (i, 0, 0)),
                  pl.BlockSpec((c1p, 1), lambda i: (0, 0)),
                  pl.BlockSpec((c1p, 1), lambda i: (0, 0)),
                  pl.BlockSpec((c2, k * k * c1p), lambda i: (0, 0)),
                  pl.BlockSpec((k * k * c1p, m), lambda i: (0, 0))],
        out_specs=(pl.BlockSpec((1, c2, m), lambda i: (i, 0, 0)),
                   pl.BlockSpec((1, c2, 128), lambda i: (i, 0, 0))),
        compiler_params=_cparams(1),
    )(r1p, scale1p, bias1p, w2f, masks)


# --------------------------------------------------------------------------- #
# Stage C: BN-apply shortcut, channel `Concat`, BN-apply residual + add.
# Tiled over (B, M) so v7x megacore gets several pipelined steps per core;
# output aliased onto the dead r2 input.
# --------------------------------------------------------------------------- #
def _stage_c_kernel(r2_ref, sc2_ref, bi2_ref, ts_ref, scs_ref, bis_ref, x_ref,
                    o_ref):
    temp = ts_ref[0] * scs_ref[...] + bis_ref[...]           # shortcut BN
    cat = jnp.concatenate([temp, x_ref[0]], axis=0)          # the `Concat` (channel dim)
    o_ref[0] = r2_ref[0] * sc2_ref[...] + bi2_ref[...] + cat


def _pick_m_tile(m):
    for tm in (512, 384, 256, 128):
        if m % tm == 0 and m // tm >= 2:
            return tm
    return m


def _stage_c(r2, scale2, bias2, tsrc, scale_s, bias_s, xk):
    b, c2, m = r2.shape
    csc = tsrc.shape[1]
    cin = xk.shape[1]
    tm = _pick_m_tile(m)
    return pl.pallas_call(
        _stage_c_kernel,
        out_shape=jax.ShapeDtypeStruct((b, c2, m), jnp.float32),
        grid=(b, m // tm),
        in_specs=[pl.BlockSpec((1, c2, tm), lambda i, j: (i, 0, j)),
                  pl.BlockSpec((c2, 1), lambda i, j: (0, 0)),
                  pl.BlockSpec((c2, 1), lambda i, j: (0, 0)),
                  pl.BlockSpec((1, csc, tm), lambda i, j: (i, 0, j)),
                  pl.BlockSpec((csc, 1), lambda i, j: (0, 0)),
                  pl.BlockSpec((csc, 1), lambda i, j: (0, 0)),
                  pl.BlockSpec((1, cin, tm), lambda i, j: (i, 0, j))],
        out_specs=pl.BlockSpec((1, c2, tm), lambda i, j: (i, 0, j)),
        input_output_aliases={0: 0},        # reuse r2's HBM buffer for the output
        compiler_params=_cparams(2),
    )(r2, scale2, bias2, tsrc, scale_s, bias_s, xk)


# --------------------------------------------------------------------------- #
# BatchNorm finalisation (tiny, exact global (T,B,H,W) statistics).
# --------------------------------------------------------------------------- #
def _bn_affine(stats, gamma, count):
    s1 = jnp.sum(stats[:, :, 0], axis=0)
    s2 = jnp.sum(stats[:, :, 1], axis=0)
    mean = s1 / count
    var = jnp.maximum(s2 / count - mean * mean, 0.0)    # clamp single-pass variance
    scale = gamma * lax.rsqrt(var + BN_EPS)
    bias = -mean * scale                                # beta = 0
    return scale.reshape(-1, 1), bias.reshape(-1, 1)


# --------------------------------------------------------------------------- #
# ConcatBlock_ms forward (fused Pallas pipeline).
# --------------------------------------------------------------------------- #
@functools.partial(jax.jit, static_argnames=("k_size", "stride", "npy_roll"))
def _forward_impl(x, w1, w2, w_sc, *, k_size, stride, npy_roll):
    if stride != 1:
        # TODO(synk): stride>1 (strided Snn_Conv2d + MaxPool3d((1,s,s))) is not
        # implemented in the fused Pallas path; the module default is stride=1.
        raise NotImplementedError("stride > 1 not supported in the Pallas path")
    t, b, cin, h, w = x.shape
    c1 = w1.shape[0]
    c2 = w2.shape[0]
    hw = h * w
    m = t * hw
    n = t * b * hw
    cinp = _round8(cin)
    c1p = _round8(c1)

    xk = _to_ctm(x).astype(jnp.float32)                      # (B, cin, M)
    xp = jnp.pad(xk, ((0, 0), (0, cinp - cin), (0, 0)))      # (B, cin_pad, M)
    masks_a = _build_masks(k_size, t, h, w, cinp)
    masks_b = masks_a if c1p == cinp else _build_masks(k_size, t, h, w, c1p)
    w_comb, csc, cscp, _ = _build_stage_a_weight(w1, w_sc, k_size, cinp)
    w2f = _flatten_w_padded(w2, c1p).astype(jnp.bfloat16)

    if w_sc is not None:
        assert w_sc.shape[2:] == (1, 1) and csc + cin == c2
        s_out, r1p, s_stats, r1_stats = _stage_a(
            xp, w_comb, masks_a, t=t, h=h, w=w, k=k_size,
            csc=csc, cscp=cscp, c1p=c1p, npy_roll=npy_roll)
    else:
        assert 2 * cin == c2
        r1p, r1_stats = _stage_a_ns(
            xp, w_comb, masks_a, t=t, h=h, w=w, k=k_size, npy_roll=npy_roll)

    scale1, bias1 = _bn_affine(r1_stats[:, :c1, :], THRESH, n)
    scale1p = jnp.pad(scale1, ((0, c1p - c1), (0, 0)))       # pad channels stay 0
    bias1p = jnp.pad(bias1, ((0, c1p - c1), (0, 0)))
    r2, r2_stats = _stage_b(r1p, scale1p, bias1p, w2f, masks_b,
                            t=t, h=h, w=w, k=k_size, npy_roll=npy_roll)

    scale2, bias2 = _bn_affine(r2_stats, 0.2 * THRESH, n)
    if w_sc is not None:
        scale_s, bias_s = _bn_affine(s_stats, THRESH, n)
        tsrc = s_out
    else:
        scale_s = jnp.ones((cin, 1), jnp.float32)
        bias_s = jnp.zeros((cin, 1), jnp.float32)
        tsrc = xk

    out = _stage_c(r2, scale2, bias2, tsrc, scale_s, bias_s, xk)
    return _from_ctm(out, t, h, w)


def concat_block_ms_forward(x, w1, w2, w_sc=None, k_size=3, stride=1):
    # Resolve the pltpu.roll sign convention outside jit, pass it in as static.
    return _forward_impl(x, w1, w2, w_sc, k_size=k_size, stride=stride,
                         npy_roll=_roll_npy())


# --------------------------------------------------------------------------- #
# Pure-JAX references (sanity checks only).
# --------------------------------------------------------------------------- #
def ref_mem_update(x):
    mem = x[0]
    spike = (mem > THRESH).astype(jnp.float32)
    outs = [spike]
    for i in range(1, x.shape[0]):
        mem = mem * DECAY * (1.0 - spike) + x[i]
        spike = (mem > THRESH).astype(jnp.float32)
        outs.append(spike)
    return jnp.stack(outs)


def ref_conv(x5d, w_oihw, stride, pad):
    t, b, c, h, w = x5d.shape
    x4 = x5d.reshape(t * b, c, h, w)
    y = lax.conv_general_dilated(
        x4, w_oihw, (stride, stride), [(pad, pad), (pad, pad)],
        dimension_numbers=("NCHW", "OIHW", "NCHW"),
        precision=lax.Precision.HIGHEST)
    o = w_oihw.shape[0]
    return y.reshape(t, b, o, y.shape[2], y.shape[3])


def ref_bn(x5d, gamma):
    mean = jnp.mean(x5d, axis=(0, 1, 3, 4), keepdims=True)
    var = jnp.mean((x5d - mean) ** 2, axis=(0, 1, 3, 4), keepdims=True)
    return gamma * (x5d - mean) * lax.rsqrt(var + BN_EPS)


def ref_forward(x, w1, w2, w_sc, k_size=3, stride=1):
    pad = 1 if k_size == 3 else 0
    if w_sc is not None:
        s = ref_mem_update(x)
        s = ref_conv(s, w_sc, 1, 0)
        temp = ref_bn(s, THRESH)
    else:
        temp = x
    cat = jnp.concatenate([temp, x], axis=2)
    r = ref_mem_update(x)
    r = ref_conv(r, w1, stride, pad)
    r = ref_bn(r, THRESH)
    r = ref_mem_update(r)
    r = ref_conv(r, w2, 1, pad)
    return ref_bn(r, 0.2 * THRESH) + cat


if __name__ == "__main__":
    T, B = TIME_WINDOW, 2
    in_c, out_c = 4, 8
    H = W = 16
    k_size, stride = 3, 1
    c_ = out_c // 2

    key = jax.random.PRNGKey(0)
    kx, k1, k2, k3 = jax.random.split(key, 4)
    x = jax.random.normal(kx, (T, B, in_c, H, W), jnp.float32)
    w1 = 0.1 * jax.random.normal(k1, (c_, in_c, k_size, k_size), jnp.float32)
    w2 = 0.1 * jax.random.normal(k2, (out_c, c_, k_size, k_size), jnp.float32)
    w_sc = 0.1 * jax.random.normal(k3, (out_c - in_c, in_c, 1, 1), jnp.float32)

    # The kernels use bf16 weights on the MXU; compare against references built
    # from the same bf16-rounded weights so tolerances stay tight.
    bf = lambda a: a.astype(jnp.bfloat16).astype(jnp.float32)
    w1_q, w2_q, wsc_q = bf(w1), bf(w2), bf(w_sc)

    npy = _roll_npy()

    # ---- Stage A check (LIF + fused {1x1 shortcut + 3x3} conv, single matmul). ----
    cinp = _round8(in_c)
    xk = _to_ctm(x).astype(jnp.float32)
    xp = jnp.pad(xk, ((0, 0), (0, cinp - in_c), (0, 0)))
    masks = _build_masks(k_size, T, H, W, cinp)
    w_comb, csc, cscp, c1p = _build_stage_a_weight(w1, w_sc, k_size, cinp)
    s_out, r1p, s_stats, r1_stats = _stage_a(
        xp, w_comb, masks, t=T, h=H, w=W, k=k_size,
        csc=csc, cscp=cscp, c1p=c1p, npy_roll=npy)

    spk_ref = ref_mem_update(x)
    r1_ref5 = ref_conv(spk_ref, w1_q, 1, (k_size - 1) // 2)
    s_ref5 = ref_conv(spk_ref, wsc_q, 1, 0)
    r1_k = _from_ctm(r1p[:, :c_, :], T, H, W)
    s_k = _from_ctm(s_out, T, H, W)
    assert float(jnp.max(jnp.abs(r1_k - r1_ref5))) < 1e-3
    assert float(jnp.max(jnp.abs(s_k - s_ref5))) < 1e-3
    got_sum = jnp.sum(r1_stats[:, :c_, 0], axis=0)
    ref_sum = jnp.sum(r1_ref5, axis=(0, 1, 3, 4))
    assert float(jnp.max(jnp.abs(got_sum - ref_sum))) < 1e-1

    # ---- Full fused forward vs. pure-JAX reference. ----
    out = concat_block_ms_forward(x, w1, w2, w_sc, k_size=k_size, stride=stride)
    out = jax.block_until_ready(out)
    assert out.shape == (T, B, out_c, H, W)
    ref = ref_forward(x, w1_q, w2_q, wsc_q, k_size=k_size, stride=stride)
    # Mean-abs criterion: isolated LIF threshold-boundary flips between the two
    # float-op orderings are possible and benign; layout/stat bugs would blow this up.
    assert float(jnp.mean(jnp.abs(out - ref))) < 1e-3

    print("KERNEL_OK")
</pallas_src>

<mosaic_0001>
module attributes {stable_mosaic.version = 11 : i64} {
  func.func @kern(%arg0: memref<8x128xf32, #tpu.memory_space<vmem>>, %arg1: memref<8x128xf32, #tpu.memory_space<vmem>>) attributes {dimension_semantics = [], scalar_prefetch = 0 : i64, scratch_operands = 0 : i64, tpu.core_type = #tpu.core_type<tc>} {
    %c0 = arith.constant 0 : index
    %c0_0 = arith.constant 0 : index
    %0 = vector.load %arg0[%c0, %c0_0] : memref<8x128xf32, #tpu.memory_space<vmem>>, vector<8x128xf32>
    %c1_i32 = arith.constant 1 : i32
    %1 = tpu.dynamic_rotate %0 by %c1_i32 dim 1 : vector<8x128xf32>, i32 -> vector<8x128xf32>
    %c0_1 = arith.constant 0 : index
    %c0_2 = arith.constant 0 : index
    %2 = vector.load %arg1[%c0_1, %c0_2] : memref<8x128xf32, #tpu.memory_space<vmem>>, vector<8x128xf32>
    tpu.vector_store %arg1[%c0_1, %c0_2], %1 {strides = array<i32>} : memref<8x128xf32, #tpu.memory_space<vmem>>, vector<8x128xf32>,
    return
  }
}

</mosaic_0001>

<llo_original>
// kernel: tpu_custom_call.1
$region0: #{tpu_custom_call.1}
  #allocation0 [shape = 'u32[]', space=smem, size = 0x4, offset = 0x4, fixed_abs, tag = 'smem constant byte address 0x4 - core index']
  #allocation1 [shape = 'u32[72,128]{1,0:T(1,128)}', space=vmem, size = 0x9000, scoped, tag = 'internal scratch']
  %s0 = inlined_call_operand.hbm [shape: f32[8,128], index: 0, kind: input, shape index: {}]
  %s1 = inlined_call_operand.hbm [shape: f32[8,128], index: 1, kind: output, shape index: {}]
  %s2 = sld [smem:[#allocation0]]
  $region18: #{tpu_custom_call.1} parent=0
    _
  %s4 = ssub.s32 1, %s2
  %s5 = scalar_select 0, %s4, %s2
  $region1: #{tpu_custom_call.1} parent=0
    #allocation2 [shape = 'u8[4096]{0}', space=vmem, size = 0x1000, scoped, tag = 'input window, operand 0, single buffered']
    #allocation3 [shape = 's32[1]{0}', space=sflag, size = 0x4, scoped, tag = 'scoped memory for tpu_custom_call.1']
    #allocation4 [shape = 's32[1]{0}', space=sflag, size = 0x4, scoped, tag = 'scoped memory for tpu_custom_call.1']
    #allocation5 [shape = 'u8[4096]{0}', space=vmem, size = 0x1000, scoped, tag = 'output window, operand 0, single buffered']
    %6 = vsyncpa [#allocation3], 0
    %7 = vsyncpa [#allocation4], 0
    // Predicated region
    $region2: #{tpu_custom_call.1} parent=1 // pred_check
      _
    $region3: #{tpu_custom_call.1} parent=1 // pred_check_branch
      %9 = sbr.rel (0) target = $region5
    $region4: #{tpu_custom_call.1} parent=1 // pred_region
      %11 = vsyncadd [#allocation3], 0
      %s13 = sshll.u32 %s0, 4
      %s14 = int_to_ptr.hbm [resolvable:$true] %s13
      %s15 = sshll.u32 [#allocation2], 4
      %s16 = int_to_ptr.vmem [resolvable:$true] %s15
      %18 = dma.hbm_to_vmem [thread:$0]  %s14, 128, %s16, [#allocation3]
    $region5: #{tpu_custom_call.1} parent=1 // pred_fallthru
      _
    // Predicated region
    $region6: #{tpu_custom_call.1} parent=1 // pred_check
      _
    $region7: #{tpu_custom_call.1} parent=1 // pred_check_branch
      %20 = sbr.rel (0) target = $region9
    $region8: #{tpu_custom_call.1} parent=1 // pred_region
      %22 = dma.done [#allocation3], 128
    $region9: #{tpu_custom_call.1} parent=1 // pred_fallthru
      _
    %v23 = vld [vmem:[#allocation2] sm:$0xff]
    %24 = vrot.lane.b32.xlu0 %v23, 1
    %v25 = vpop.permute.xlu0 %24
    %26 = vst [vmem:[#allocation5] sm:$0xff] %v25
    // Predicated region
    $region10: #{tpu_custom_call.1} parent=1 // pred_check
      _
    $region11: #{tpu_custom_call.1} parent=1 // pred_check_branch
      %28 = sbr.rel (0) target = $region13
    $region12: #{tpu_custom_call.1} parent=1 // pred_region
      %30 = vsyncadd [#allocation4], 0
      %s32 = sshll.u32 [#allocation5], 4
      %s33 = int_to_ptr.vmem [resolvable:$true] %s32
      %s34 = sshll.u32 %s1, 4
      %s35 = int_to_ptr.hbm [resolvable:$true] %s34
      %37 = dma.vmem_to_hbm [thread:$0]  %s33, 128, %s35, [#allocation4]
    $region13: #{tpu_custom_call.1} parent=1 // pred_fallthru
      _
    // Predicated region
    $region14: #{tpu_custom_call.1} parent=1 // pred_check
      _
    $region15: #{tpu_custom_call.1} parent=1 // pred_check_branch
      %39 = sbr.rel (0) target = $region17
    $region16: #{tpu_custom_call.1} parent=1 // pred_region
      %41 = dma.done [#allocation4], 128
    $region17: #{tpu_custom_call.1} parent=1 // pred_fallthru
      _
    %42 = vsyncpa [#allocation3], 1
    %43 = vsyncpa [#allocation4], 1

</llo_original>
